<compile_context>
chip_gen: v7x
topology: tpu7x:2x2x1
jax: 0.10.0
libtpu: 0.0.40
codegen_flags: <defaults>
</compile_context>

<pallas_src>
import math

import jax
import jax.numpy as jnp
import numpy as np
from jax.experimental import pallas as pl
from jax.experimental.pallas import tpu as pltpu


def _time_embed_kernel(s_ref, c_ref, tab_ref, o_ref):
    # s_ref, c_ref: (tb, 1)  f32 -- sin / cos of the scaled timestep, per row
    # tab_ref:      (2, dim) f32 -- per-column coefficients [A; B]
    # o_ref:        (tb, dim)    -- out = s * A + c * B
    a = tab_ref[0:1, :]                                    # (1, dim)
    b = tab_ref[1:2, :]                                    # (1, dim)
    o_ref[...] = (s_ref[...] * a + c_ref[...] * b).astype(o_ref.dtype)


def _round_up(x, m):
    return ((x + m - 1) // m) * m


def _coeff_table(dim):
    """(2, dim) f32 table such that out[:, c] = sin(t)*tab[0, c] + cos(t)*tab[1, c]."""
    half_dim = dim // 2
    cos_dim = dim - half_dim
    half_pi = 0.5 * np.pi
    bias_sin = (np.arange(half_dim, dtype=np.float64) / half_dim) * half_pi
    bias_cos = (np.arange(cos_dim, dtype=np.float64) / cos_dim) * half_pi
    # sin(t + b) =  sin(t)cos(b) + cos(t)sin(b)
    # cos(t + b) = -sin(t)sin(b) + cos(t)cos(b)
    coef_s = np.concatenate([np.cos(bias_sin), -np.sin(bias_cos)])
    coef_c = np.concatenate([np.sin(bias_sin), np.cos(bias_cos)])
    return jnp.asarray(np.stack([coef_s, coef_c]), dtype=jnp.float32)


def time_embed(x, dim, total_time, *, out_dtype=jnp.float32, target_block_bytes=4 << 20):
    """Pallas equivalent of TimeEmbedder.forward. x: (B,) -> (B, dim)."""
    assert dim >= 2, "dim must be >= 2 (half_dim must be >= 1)"
    assert total_time > 1, "total_time must be > 1"
    B = int(x.shape[0])

    # Fold the rel_t rescale and the pi/2 factor into one scalar; per-row
    # sin/cos computed once in the wrapper (B transcendentals, negligible).
    scale = 0.5 * math.pi / float(total_time - 1)
    t = x.astype(jnp.float32) * scale
    s_col = jnp.sin(t).reshape(B, 1)
    c_col = jnp.cos(t).reshape(B, 1)
    tab = _coeff_table(dim)

    out_bytes = jnp.dtype(out_dtype).itemsize
    sublane = 8 if out_bytes >= 4 else (16 if out_bytes == 2 else 32)

    # ~4 MiB output tile, sublane-aligned; with 2 output buffers + tiny inputs
    # this stays well under v7x's 32 MiB scoped-VMEM default.
    tb = max(sublane, (target_block_bytes // max(dim * out_bytes, 1)) // sublane * sublane)
    tb = min(tb, 8192)
    if B >= 32:
        # Guarantee >= 2 grid steps so v7x's two TensorCores both get work.
        tb = min(tb, _round_up((B + 1) // 2, sublane))
    if tb >= B:
        tb = B  # single full-extent block (always a legal block shape)

    grid = (pl.cdiv(B, tb),)

    return pl.pallas_call(
        _time_embed_kernel,
        out_shape=jax.ShapeDtypeStruct((B, dim), out_dtype),
        grid_spec=pltpu.PrefetchScalarGridSpec(
            num_scalar_prefetch=0,
            grid=grid,
            in_specs=[
                pl.BlockSpec((tb, 1), lambda i: (i, 0)),
                pl.BlockSpec((tb, 1), lambda i: (i, 0)),
                pl.BlockSpec((2, dim), lambda i: (0, 0)),   # constant: fetched once
            ],
            out_specs=pl.BlockSpec((tb, dim), lambda i: (i, 0)),
        ),
        compiler_params=pltpu.CompilerParams(
            dimension_semantics=("parallel",),
        ),
    )(s_col, c_col, tab)


def _reference(x, dim, total_time):
    """Pure-JAX transcription of the PyTorch forward."""
    half_dim = dim // 2
    cos_dim = dim - half_dim
    rel_t = x.astype(jnp.float32) / (total_time - 1)
    sin_bias = jnp.linspace(0.0, 1.0, half_dim + 1)[:-1]
    cos_bias = jnp.linspace(0.0, 1.0, cos_dim + 1)[:-1]
    emb_sin = jnp.sin((rel_t[:, None] + sin_bias[None, :]) * 0.5 * math.pi)
    emb_cos = jnp.cos((rel_t[:, None] + cos_bias[None, :]) * 0.5 * math.pi)
    return jnp.concatenate([emb_sin, emb_cos], axis=-1)


if __name__ == "__main__":
    B = 64
    DIM = 128
    TOTAL_TIME = 1000

    key = jax.random.PRNGKey(0)
    # Diffusion timestep indices in [0, total_time), as floats.
    x = jax.random.randint(key, (B,), 0, TOTAL_TIME).astype(jnp.float32)

    out = jax.block_until_ready(time_embed(x, DIM, TOTAL_TIME))
    ref = _reference(x, DIM, TOTAL_TIME)

    assert out.shape == (B, DIM), out.shape
    max_err = float(jnp.max(jnp.abs(out - ref)))
    assert jnp.allclose(out, ref, atol=1e-4, rtol=1e-4), max_err

    print("KERNEL_OK")
</pallas_src>

<mosaic_0001>
module attributes {stable_mosaic.version = 11 : i64} {
  func.func @_time_embed_kernel(%arg0: i32, %arg1: memref<32x1xf32, #tpu.memory_space<vmem>>, %arg2: memref<32x1xf32, #tpu.memory_space<vmem>>, %arg3: memref<2x128xf32, #tpu.memory_space<vmem>>, %arg4: memref<32x128xf32, #tpu.memory_space<vmem>>) attributes {dimension_semantics = [#tpu.dimension_semantics<parallel>], iteration_bounds = array<i64: 2>, scalar_prefetch = 0 : i64, scratch_operands = 0 : i64, tpu.core_type = #tpu.core_type<tc>, window_params = [{transform_indices = @transform_0, window_bounds = array<i64: 32, 1>}, {transform_indices = @transform_1, window_bounds = array<i64: 32, 1>}, {pipeline_mode = #tpu.pipeline_mode<synchronous>, transform_indices = @transform_2, window_bounds = array<i64: 2, 128>}, {transform_indices = @transform_3, window_bounds = array<i64: 32, 128>}]} {
    %c0 = arith.constant 0 : index
    %c0_0 = arith.constant 0 : index
    %0 = vector.load %arg3[%c0, %c0_0] : memref<2x128xf32, #tpu.memory_space<vmem>>, vector<1x128xf32>
    %c1 = arith.constant 1 : index
    %c0_1 = arith.constant 0 : index
    %1 = vector.load %arg3[%c1, %c0_1] : memref<2x128xf32, #tpu.memory_space<vmem>>, vector<1x128xf32>
    %c0_2 = arith.constant 0 : index
    %c0_3 = arith.constant 0 : index
    %2 = vector.load %arg1[%c0_2, %c0_3] : memref<32x1xf32, #tpu.memory_space<vmem>>, vector<32x1xf32>
    %3 = vector.broadcast %2 : vector<32x1xf32> to vector<32x128xf32>
    %4 = vector.broadcast %0 : vector<1x128xf32> to vector<32x128xf32>
    %5 = arith.mulf %3, %4 : vector<32x128xf32>
    %c0_4 = arith.constant 0 : index
    %c0_5 = arith.constant 0 : index
    %6 = vector.load %arg2[%c0_4, %c0_5] : memref<32x1xf32, #tpu.memory_space<vmem>>, vector<32x1xf32>
    %7 = vector.broadcast %6 : vector<32x1xf32> to vector<32x128xf32>
    %8 = vector.broadcast %1 : vector<1x128xf32> to vector<32x128xf32>
    %9 = arith.mulf %7, %8 : vector<32x128xf32>
    %10 = arith.addf %5, %9 : vector<32x128xf32>
    %c0_6 = arith.constant 0 : index
    %c0_7 = arith.constant 0 : index
    %11 = vector.load %arg4[%c0_6, %c0_7] : memref<32x128xf32, #tpu.memory_space<vmem>>, vector<32x128xf32>
    tpu.vector_store %arg4[%c0_6, %c0_7], %10 {strides = array<i32>} : memref<32x128xf32, #tpu.memory_space<vmem>>, vector<32x128xf32>,
    return
  }
  func.func @transform_0(%arg0: i32) -> (i32, i32) {
    %c0_i32 = arith.constant 0 : i32
    %c0_i32_0 = arith.constant 0 : i32
    return %arg0, %c0_i32 : i32, i32
  }
  func.func @transform_1(%arg0: i32) -> (i32, i32) {
    %c0_i32 = arith.constant 0 : i32
    %c0_i32_0 = arith.constant 0 : i32
    return %arg0, %c0_i32 : i32, i32
  }
  func.func @transform_2(%arg0: i32) -> (i32, i32) {
    %c0_i32 = arith.constant 0 : i32
    %c0_i32_0 = arith.constant 0 : i32
    %c0_i32_1 = arith.constant 0 : i32
    return %c0_i32, %c0_i32_0 : i32, i32
  }
  func.func @transform_3(%arg0: i32) -> (i32, i32) {
    %c0_i32 = arith.constant 0 : i32
    %c0_i32_0 = arith.constant 0 : i32
    return %arg0, %c0_i32 : i32, i32
  }
}

</mosaic_0001>

<llo_original>
// kernel: tpu_custom_call.1
$region0: #{tpu_custom_call.1}
  #allocation0 [shape = 'u32[]', space=smem, size = 0x4, offset = 0x4, fixed_abs, tag = 'smem constant byte address 0x4 - core index']
  #allocation1 [shape = 'u32[144,128]{1,0:T(1,128)}', space=vmem, size = 0x12000, scoped, tag = 'internal scratch']
  %s0 = inlined_call_operand.vmem [shape: f32[64,1], index: 0, kind: input, shape index: {}]
  %s1 = inlined_call_operand.vmem [shape: f32[64,1], index: 1, kind: input, shape index: {}]
  %s2 = inlined_call_operand.vmem [shape: f32[2,128], index: 2, kind: input, shape index: {}]
  %s3 = inlined_call_operand.hbm [shape: f32[64,128], index: 3, kind: output, shape index: {}]
  %s4 = sld [smem:[#allocation0]]
  $region45: #{tpu_custom_call.1} parent=0
    _
  %s6 = ssub.s32 1, %s4
  %s7 = scalar_select 0, %s6, %s4
  $region1: #{tpu_custom_call.1} parent=0
    #allocation2 [shape = 'u8[32768]{0}', space=vmem, size = 0x8000, scoped, tag = 'output window, operand 0']
    #allocation3 [shape = 's32[2]{0}', space=sflag, size = 0x8, scoped, tag = 'scoped memory for tpu_custom_call.1']
    %8 = vsyncpa [#allocation3], 0
    %s9 = scalar_lea.sflag [#allocation3], 1
    %10 = vsyncpa %s9, 0
    loop: start=0, step=1, limit=4
    $region2: #{tpu_custom_call.1} parent=1 // loop_pre_header
      _
    $region3: #{tpu_custom_call.1} parent=1 // loop_header
      %s12 = sphi 0, %s16
      %p13 = scmp.ge.s32.totalorder %s12, 4
      %s22 = sphi 0, %s24
      %s25 = sphi 0, %s22
      %s26 = sphi 0, %s25
      %s42 = sphi 0, %s26
      %s48 = sphi 0, %s50
      %s51 = sphi 0, %s48
      %s52 = sphi 0, %s51
      %s68 = sphi 0, %s52
      %s72 = sphi 0, %s72
      %s74 = sphi 0, %s72
      %s75 = sphi 0, %s74
      %s89 = sphi 0, %s75
      %s95 = sphi 0, %s97
      %s98 = sphi 0, %s95
      %s99 = sphi 0, %s98
      %s115 = sphi 0, %s99
    $region4: #{tpu_custom_call.1} parent=1 // loop_header_branch
      %15 = sbr.rel (%p13) target = $region8
    $region5: #{tpu_custom_call.1} parent=1 // loop_body
      %s17 = ssub.s32 %s12, 1
      %s18 = ssub.s32 %s12, 2
      %s19 = sadd.s32 %s12, 1
      %s20 = ssub.s32 %s12, %s19
      %p21 = scmp.eq.s32.totalorder %s20, 0
      %s23 = sadd.s32 %s22, 1
      %s24 = scalar_select %p21, %s22, %s23
      %p27 = pneg %p21
      %p28 = scmp.eq.s32.totalorder %s12, 1
      %p29 = por %p27, %p28
      %p30 = scmp.ne.s32.totalorder %s22, %s25
      %p31 = scmp.eq.s32.totalorder %s12, 0
      %p32 = por %p30, %p31
      %p33 = scmp.ne.s32.totalorder %s22, %s25
      %p34 = scmp.eq.s32.totalorder %s17, 1
      %p35 = por %p33, %p34
      %p36 = scmp.ne.s32.totalorder %s25, %s26
      %p37 = scmp.eq.s32.totalorder %s17, 0
      %p38 = por %p36, %p37
      %p39 = scmp.ne.s32.totalorder %s25, %s26
      %p40 = scmp.eq.s32.totalorder %s18, 1
      %p41 = por %p39, %p40
      %p43 = scmp.ne.s32.totalorder %s26, %s42
      %p44 = scmp.eq.s32.totalorder %s18, 0
      %p45 = por %p43, %p44
      %s46 = ssub.s32 %s12, %s19
      %p47 = scmp.eq.s32.totalorder %s46, 0
      %s49 = sadd.s32 %s48, 1
      %s50 = scalar_select %p47, %s48, %s49
      %p53 = pneg %p47
      %p54 = scmp.eq.s32.totalorder %s12, 1
      %p55 = por %p53, %p54
      %p56 = scmp.ne.s32.totalorder %s48, %s51
      %p57 = scmp.eq.s32.totalorder %s12, 0
      %p58 = por %p56, %p57
      %p59 = scmp.ne.s32.totalorder %s48, %s51
      %p60 = scmp.eq.s32.totalorder %s17, 1
      %p61 = por %p59, %p60
      %p62 = scmp.ne.s32.totalorder %s51, %s52
      %p63 = scmp.eq.s32.totalorder %s17, 0
      %p64 = por %p62, %p63
      %p65 = scmp.ne.s32.totalorder %s51, %s52
      %p66 = scmp.eq.s32.totalorder %s18, 1
      %p67 = por %p65, %p66
      %p69 = scmp.ne.s32.totalorder %s52, %s68
      %p70 = scmp.eq.s32.totalorder %s18, 0
      %p71 = por %p69, %p70
      %s73 = sadd.s32 %s72, 1
      %p76 = scmp.eq.s32.totalorder %s12, 1
      %p77 = scmp.ne.s32.totalorder %s72, %s74
      %p78 = scmp.eq.s32.totalorder %s12, 0
      %p79 = por %p77, %p78
      %p80 = scmp.ne.s32.totalorder %s72, %s74
      %p81 = scmp.eq.s32.totalorder %s17, 1
      %p82 = por %p80, %p81
      %p83 = scmp.ne.s32.totalorder %s74, %s75
      %p84 = scmp.eq.s32.totalorder %s17, 0
      %p85 = por %p83, %p84
      %p86 = scmp.ne.s32.totalorder %s74, %s75
      %p87 = scmp.eq.s32.totalorder %s18, 1
      %p88 = por %p86, %p87
      %p90 = scmp.ne.s32.totalorder %s75, %s89
      %p91 = scmp.eq.s32.totalorder %s18, 0
      %p92 = por %p90, %p91
      %s93 = ssub.s32 %s12, %s19
      %p94 = scmp.eq.s32.totalorder %s93, 0
      %s96 = sadd.s32 %s95, 1
      %s97 = scalar_select %p94, %s95, %s96
      %p100 = pneg %p94
      %p101 = scmp.eq.s32.totalorder %s12, 1
      %p102 = por %p100, %p101
      %p103 = scmp.ne.s32.totalorder %s95, %s98
      %p104 = scmp.eq.s32.totalorder %s12, 0
      %p105 = por %p103, %p104
      %p106 = scmp.ne.s32.totalorder %s95, %s98
      %p107 = scmp.eq.s32.totalorder %s17, 1
      %p108 = por %p106, %p107
      %p109 = scmp.ne.s32.totalorder %s98, %s99
      %p110 = scmp.eq.s32.totalorder %s17, 0
      %p111 = por %p109, %p110
      %p112 = scmp.ne.s32.totalorder %s98, %s99
      %p113 = scmp.eq.s32.totalorder %s18, 1
      %p114 = por %p112, %p113
      %p116 = scmp.ne.s32.totalorder %s99, %s115
      %p117 = scmp.eq.s32.totalorder %s18, 0
      %p118 = por %p116, %p117
      %p119 = scmp.le.s32.totalorder 1, %s12
      %p120 = scmp.lt.s32.totalorder %s12, 3
      %p121 = pnand %p119, %p120
      %p122 = pneg %p121
      // Predicated region
      $region9: #{tpu_custom_call.1} parent=5 // pred_check
        _
      $region10: #{tpu_custom_call.1} parent=5 // pred_check_branch
        %124 = sbr.rel (%p121) target = $region12
      $region11: #{tpu_custom_call.1} parent=5 // pred_region
        %s125 = ssub.s32 %s12, 1
        // Predicated region
        $region13: #{tpu_custom_call.1} parent=11 // pred_check
          %p126 = pneg %p85
        $region14: #{tpu_custom_call.1} parent=11 // pred_check_branch
          %128 = sbr.rel (%p126) target = $region16
        $region15: #{tpu_custom_call.1} parent=11 // pred_region
          _
        $region16: #{tpu_custom_call.1} parent=11 // pred_fallthru
          _
      $region12: #{tpu_custom_call.1} parent=5 // pred_fallthru
        _
      %p129 = scmp.lt.s32.totalorder %s12, 2
      // Predicated region
      $region17: #{tpu_custom_call.1} parent=5 // pred_check
        %p130 = pneg %p129
      $region18: #{tpu_custom_call.1} parent=5 // pred_check_branch
        %132 = sbr.rel (%p130) target = $region20
      $region19: #{tpu_custom_call.1} parent=5 // pred_region
        // Predicated region
        $region21: #{tpu_custom_call.1} parent=19 // pred_check
          %p133 = pneg %p32
        $region22: #{tpu_custom_call.1} parent=19 // pred_check_branch
          %135 = sbr.rel (%p133) target = $region24
        $region23: #{tpu_custom_call.1} parent=19 // pred_region
          %s136 = smul.u32 4, %s12
          %p137 = scmp.lt.s32.totalorder %s136, 7
          %s138 = scalar_select %p137, %s136, 7
          %s139 = smul.addr %s138, 8
          %s140 = scalar_lea.vmem %s0, %s139
          %s141 = smul.u32 4, %s12
        $region24: #{tpu_custom_call.1} parent=19 // pred_fallthru
          _
        // Predicated region
        $region25: #{tpu_custom_call.1} parent=19 // pred_check
          %p142 = pneg %p58
        $region26: #{tpu_custom_call.1} parent=19 // pred_check_branch
          %144 = sbr.rel (%p142) target = $region28
        $region27: #{tpu_custom_call.1} parent=19 // pred_region
          %s145 = smul.u32 4, %s12
          %p146 = scmp.lt.s32.totalorder %s145, 7
          %s147 = scalar_select %p146, %s145, 7
          %s148 = smul.addr %s147, 8
          %s149 = scalar_lea.vmem %s1, %s148
          %s150 = smul.u32 4, %s12
        $region28: #{tpu_custom_call.1} parent=19 // pred_fallthru
          _
      $region20: #{tpu_custom_call.1} parent=5 // pred_fallthru
        _
      %p151 = scmp.le.s32.totalorder 1, %s12
      %p152 = scmp.lt.s32.totalorder %s12, 3
      %p153 = pnand %p151, %p152
      %p154 = pneg %p153
      // Predicated region
      $region29: #{tpu_custom_call.1} parent=5 // pred_check
        _
      $region30: #{tpu_custom_call.1} parent=5 // pred_check_branch
        %156 = sbr.rel (%p153) target = $region32
      $region31: #{tpu_custom_call.1} parent=5 // pred_region
        %s157 = ssub.s32 %s12, 1
        %s158 = smul.u32 4, %s17
        %p159 = scmp.lt.s32.totalorder %s158, 7
        %s160 = scalar_select %p159, %s158, 7
        %s161 = smul.addr %s160, 8
        %s162 = scalar_lea.vmem %s0, %s161
        %p163 = pneg %p38
        %p164 = pneg %p35
        %s165 = smul.u32 4, %s17
        %p166 = scmp.lt.s32.totalorder %s165, 7
        %s167 = scalar_select %p166, %s165, 7
        %s168 = smul.addr %s167, 8
        %s169 = scalar_lea.vmem %s1, %s168
        %p170 = pneg %p64
        %p171 = pneg %p61
        %p172 = pneg %p85
        %p173 = pneg %p82
        %p174 = pneg %p111
        %p175 = pneg %p108
        %s176 = sand.u32 %s98, 1
        %s177 = scalar_lea.sflag [#allocation3], %s176
        %s178 = sand.u32 %s98, 1
        %s179 = smul.addr %s178, 32
        %s180 = scalar_lea.vmem [#allocation2], %s179
        %s181 = smul.u32 4, %s17
        %p182 = scmp.lt.s32.totalorder %s181, 7
        %s183 = scalar_select %p182, %s181, 7
        %s184 = smul.addr %s183, 8
        %s185 = scalar_lea.vmem %s0, %s184
        %s186 = smul.u32 4, %s17
        %s187 = smul.u32 4, %s17
        %p188 = scmp.lt.s32.totalorder %s187, 7
        %s189 = scalar_select %p188, %s187, 7
        %s190 = smul.addr %s189, 8
        %s191 = scalar_lea.vmem %s1, %s190
        %s192 = smul.u32 4, %s17
        %s193 = smul.u32 4, %s17
        %v194 = vld [vmem:[%s2] sm:$0x1]
        %v195 = vld [vmem:[%s2 + $0x1] sm:$0x1]
        %v196 = vld [vmem:[%s185] sm:$0xff]
        %v197 = vld [vmem:[%s185 + $0x8] sm:$0xff]
        %v198 = vld [vmem:[%s185 + $0x10] sm:$0xff]
        %v199 = vld [vmem:[%s185 + $0x18] sm:$0xff]
        %201 = vset.pattern.permute.xlu0 0
        %202 = vperm.xlu0 %201, %v196
        %v203 = vpop.permute.xlu0 %202
        %206 = vset.pattern.permute.xlu0 0
        %207 = vperm.xlu0 %206, %v197
        %v208 = vpop.permute.xlu0 %207
        %211 = vset.pattern.permute.xlu0 0
        %212 = vperm.xlu0 %211, %v198
        %v213 = vpop.permute.xlu0 %212
        %216 = vset.pattern.permute.xlu0 0
        %217 = vperm.xlu0 %216, %v199
        %v218 = vpop.permute.xlu0 %217
        %v220 = vlaneseq
        %v221 = vshrl.u32 %v220, 7
        %v222 = vsub.s32 0, %v221
        %v223 = vrot.slane %v194, %v222
        %v224 = vmul.f32 %v203, %v223
        %v225 = vmul.f32 %v208, %v223
        %v226 = vmul.f32 %v213, %v223
        %v227 = vmul.f32 %v218, %v223
        %v228 = vld [vmem:[%s191] sm:$0xff]
        %v229 = vld [vmem:[%s191 + $0x8] sm:$0xff]
        %v230 = vld [vmem:[%s191 + $0x10] sm:$0xff]
        %v231 = vld [vmem:[%s191 + $0x18] sm:$0xff]
        %233 = vset.pattern.permute.xlu0 0
        %234 = vperm.xlu0 %233, %v228
        %v235 = vpop.permute.xlu0 %234
        %238 = vset.pattern.permute.xlu0 0
        %239 = vperm.xlu0 %238, %v229
        %v240 = vpop.permute.xlu0 %239
        %243 = vset.pattern.permute.xlu0 0
        %244 = vperm.xlu0 %243, %v230
        %v245 = vpop.permute.xlu0 %244
        %248 = vset.pattern.permute.xlu0 0
        %249 = vperm.xlu0 %248, %v231
        %v250 = vpop.permute.xlu0 %249
        %v252 = vlaneseq
        %v253 = vshrl.u32 %v252, 7
        %v254 = vsub.s32 0, %v253
        %v255 = vrot.slane %v195, %v254
        %v256 = vmul.f32 %v235, %v255
        %v257 = vmul.f32 %v240, %v255
        %v258 = vmul.f32 %v245, %v255
        %v259 = vmul.f32 %v250, %v255
        %v260 = vadd.f32 %v224, %v256
        %v261 = vadd.f32 %v225, %v257
        %v262 = vadd.f32 %v226, %v258
        %v263 = vadd.f32 %v227, %v259
        %264 = vst [vmem:[%s180] sm:$0xff] %v260
        %265 = vst [vmem:[%s180 + $0x8] sm:$0xff] %v261
        %266 = vst [vmem:[%s180 + $0x10] sm:$0xff] %v262
        %267 = vst [vmem:[%s180 + $0x18] sm:$0xff] %v263
        %s268 = sand.u32 %s98, 1
        %s269 = scalar_lea.sflag [#allocation3], %s268
        %s270 = sand.u32 %s98, 1
        %s271 = smul.addr %s270, 32
        %s272 = scalar_lea.vmem [#allocation2], %s271
        // Predicated region
        $region33: #{tpu_custom_call.1} parent=31 // pred_check
          %p273 = pneg %p108
        $region34: #{tpu_custom_call.1} parent=31 // pred_check_branch
          %275 = sbr.rel (%p273) target = $region36
        $region35: #{tpu_custom_call.1} parent=31 // pred_region
          %s276 = smul.u32 4, %s17
          %s278 = ssub.s32 512, 512
          %279 = vsyncadd %s269, %s278
          %s280 = smul.addr %s276, 128
          %s281 = scalar_lea.hbm %s3, %s280
          %s282 = sshll.u32 %s272, 4
          %s283 = int_to_ptr.vmem [resolvable:$true] %s282
          %288 = dma.vmem_to_hbm [thread:$0]  %s283, 512, %s281, %s269, 128, 128, 8
        $region36: #{tpu_custom_call.1} parent=31 // pred_fallthru
          _
      $region32: #{tpu_custom_call.1} parent=5 // pred_fallthru
        _
      %p289 = scmp.le.s32.totalorder 2, %s12
      // Predicated region
      $region37: #{tpu_custom_call.1} parent=5 // pred_check
        %p290 = pneg %p289
      $region38: #{tpu_custom_call.1} parent=5 // pred_check_branch
        %292 = sbr.rel (%p290) target = $region40
      $region39: #{tpu_custom_call.1} parent=5 // pred_region
        %s293 = ssub.s32 %s12, 2
        // Predicated region
        $region41: #{tpu_custom_call.1} parent=39 // pred_check
          %p294 = pneg %p114
        $region42: #{tpu_custom_call.1} parent=39 // pred_check_branch
          %296 = sbr.rel (%p294) target = $region44
        $region43: #{tpu_custom_call.1} parent=39 // pred_region
          %s297 = sand.u32 %s99, 1
          %s298 = scalar_lea.sflag [#allocation3], %s297
          %s299 = sand.u32 %s99, 1
          %s300 = smul.addr %s299, 32
          %s301 = scalar_lea.vmem [#allocation2], %s300
          %302 = dma.done %s298, 512
        $region44: #{tpu_custom_call.1} parent=39 // pred_fallthru
          _
      $region40: #{tpu_custom_call.1} parent=5 // pred_fallthru
        _
    $region6: #{tpu_custom_call.1} parent=1 // loop_footer
      %s16 = sadd.s32 1, %s12
    $region7: #{tpu_custom_call.1} parent=1 // loop_footer_branch
      %11 = sbr.rel target = $region3
    $region8: #{tpu_custom_call.1} parent=1 // loop_exit
      _
    %303 = vsyncpa [#allocation3], 1
    %s304 = scalar_lea.sflag [#allocation3], 1
    %305 = vsyncpa %s304, 1

</llo_original>
